<compile_context>
chip_gen: v5e
topology: v5e:2x2
jax: 0.10.0
libtpu: 0.0.40
codegen_flags: <defaults>
</compile_context>

<pallas_src>
import functools
import math

import numpy as np
import jax
import jax.numpy as jnp
from jax.experimental import pallas as pl
from jax.experimental.pallas import tpu as pltpu


def _pe_kernel(v_ref, coeff_ref, off_ref, o_ref, *, two_m, n_pieces, pad_cols):
    # v_ref:     (T, n_pieces) f32  input coordinates (possibly row-folded into lanes)
    # coeff_ref: (1, W)        f32  per-output-lane frequency 2*pi*sigma^(j/m)
    # off_ref:   (1, W)        f32  per-output-lane phase offset (0 for cos, -pi/2 for sin)
    # o_ref:     (T, W)             W = n_pieces * 2m (+ pad_cols)
    v = v_ref[...]
    t = v.shape[0]
    # Expand each input lane across its 2m consecutive output lanes.  Pure lane
    # broadcast + concat on the VPU/XLU -- no MXU, exact f32.
    parts = [jnp.broadcast_to(v[:, p:p + 1], (t, two_m)) for p in range(n_pieces)]
    if pad_cols:
        parts.append(jnp.zeros((t, pad_cols), jnp.float32))
    vexp = jnp.concatenate(parts, axis=-1)
    phase = vexp * coeff_ref[...] + off_ref[...]          # exact f32 FMA (sin via -pi/2)
    # TODO(synk): if the bundle dump shows jnp.cos lowering to a long VPU polynomial and
    # it becomes the saturated slot, compute cos & sin of the m base phases sharing one
    # range reduction instead of two full-width cos evaluations.
    o_ref[...] = jnp.cos(phase).astype(o_ref.dtype)


def _round_up(x, n):
    return ((x + n - 1) // n) * n


def positional_encoding_pallas(v, sigma: float, m: int, *, out_dtype=None,
                               out_tile_bytes: int = 8 << 20):
    orig_shape = v.shape
    D = int(orig_shape[-1])
    rows = int(np.prod(orig_shape[:-1])) if len(orig_shape) > 1 else 1
    two_m = 2 * m
    out_dim = two_m * D
    out_dtype = v.dtype if out_dtype is None else out_dtype

    # ---- lane-dense output layout ----------------------------------------------------
    # Fold f rows into the lane axis so the stored last dim is a multiple of 128; the
    # folded buffer is bit-identical (row-major) to the unfolded one, so the reshape
    # back is free.  Only fold while the per-row piece count stays small; otherwise pad
    # out_dim to the next multiple of 128 and strip it afterwards.
    f = 128 // math.gcd(out_dim, 128)
    MAX_PIECES = 64
    if f > 1 and f * D > MAX_PIECES:
        f = 1
    n_pieces = f * D
    w_unpadded = f * out_dim
    pad_cols = (-w_unpadded) % 128          # 0 whenever the fold is used
    W = w_unpadded + pad_cols
    # TODO(synk): for very large D the lane-expansion loop emits O(D) concat pieces;
    # above a few hundred input features switch to a one-hot expansion on the MXU.

    # ---- per-output-lane frequency / phase-offset vectors -----------------------------
    j = np.arange(m, dtype=np.float64)
    coeffs = 2.0 * np.pi * (float(sigma) ** (j / m))
    group_coeff = np.concatenate([coeffs, coeffs])                      # cos | sin freqs
    group_off = np.concatenate([np.zeros(m), np.full(m, -np.pi / 2.0)])  # sin(x)=cos(x-pi/2)
    coeff_row = np.tile(group_coeff, n_pieces)
    off_row = np.tile(group_off, n_pieces)
    if pad_cols:
        coeff_row = np.concatenate([coeff_row, np.zeros(pad_cols)])
        off_row = np.concatenate([off_row, np.zeros(pad_cols)])
    coeff_row = jnp.asarray(coeff_row.astype(np.float32)).reshape(1, W)
    off_row = jnp.asarray(off_row.astype(np.float32)).reshape(1, W)

    # ---- fold / flatten the input ------------------------------------------------------
    v2 = v.reshape(rows, D).astype(jnp.float32)
    rows_padded = _round_up(rows, f)
    if rows_padded != rows:                 # cheap: pads the *small* input stream only
        v2 = jnp.pad(v2, ((0, rows_padded - rows), (0, 0)))
    R = rows_padded // f
    v_in = v2.reshape(R, n_pieces)

    # ---- row tiling: byte-budget sized (no fixed cap), multiple of 8 --------------------
    tile_budget = max(8, ((out_tile_bytes // (W * 4)) // 8) * 8)
    if R <= 8:
        tile_rows = R                       # block dim == full array dim is always legal
    else:
        tile_rows = max(8, min(tile_budget, (R // 8) * 8))
        if tile_rows >= R:                  # single grid step -> split for v7x's 2 TCs
            tile_rows = max(8, min((R // 8) * 8, _round_up((R + 1) // 2, 8)))
    grid = (pl.cdiv(R, tile_rows),)         # partial edge blocks are masked by Pallas

    # ---- VMEM budget ---------------------------------------------------------------------
    vmem_est = (2 * tile_rows * 4 * (W + n_pieces)   # double-buffered in/out tiles
                + 4 * 4 * W                          # resident coeff/offset rows
                + (2 << 20))                         # slack for Mosaic internal scratch
    try:
        vmem_cap = int(pltpu.get_tpu_info().vmem_capacity_bytes)
    except Exception:
        vmem_cap = 64 << 20                          # v7x per-TC VMEM (smallest case)
    vmem_limit = int(min(max(vmem_est, 16 << 20), (vmem_cap * 3) // 4))

    kernel = functools.partial(_pe_kernel, two_m=two_m, n_pieces=n_pieces,
                               pad_cols=pad_cols)

    out = pl.pallas_call(
        kernel,
        out_shape=jax.ShapeDtypeStruct((R, W), out_dtype),
        grid_spec=pltpu.PrefetchScalarGridSpec(
            num_scalar_prefetch=0,
            grid=grid,
            in_specs=[
                pl.BlockSpec((tile_rows, n_pieces), lambda i: (i, 0)),  # folded v rows
                pl.BlockSpec((1, W), lambda i: (0, 0)),  # coeff: fetched once, resident
                pl.BlockSpec((1, W), lambda i: (0, 0)),  # offset: fetched once, resident
            ],
            out_specs=pl.BlockSpec((tile_rows, W), lambda i: (i, 0)),
        ),
        compiler_params=pltpu.CompilerParams(
            dimension_semantics=("parallel",),
            vmem_limit_bytes=vmem_limit,
        ),
    )(v_in, coeff_row, off_row)

    # ---- un-fold / un-pad (pure, free reshape in the common case) -------------------------
    if f > 1:
        out = out.reshape(rows_padded, out_dim)
        if rows_padded != rows:
            out = out[:rows]      # only when rows % f != 0 (one output copy; unavoidable)
    elif pad_cols:
        out = out[:, :out_dim]    # only for awkward out_dim (one output copy)
    return out.reshape(*orig_shape[:-1], out_dim)


def _reference(v, sigma, m):
    # pure-numpy (float64) reference matching the torch implementation
    v = np.asarray(v, dtype=np.float64)
    j = np.arange(m, dtype=np.float64)
    coeffs = 2.0 * np.pi * (sigma ** (j / m))
    vp = coeffs * v[..., None]                               # (..., D, m)
    vp_cat = np.concatenate([np.cos(vp), np.sin(vp)], -1)    # (..., D, 2m)
    return vp_cat.reshape(*v.shape[:-1], v.shape[-1] * 2 * m)


if __name__ == "__main__":
    sigma = 10.0
    m = 8
    # v: (N, seq, input_size) = (2, 8, 4) -> output (2, 8, 2*m*4) = (2, 8, 64)
    key = jax.random.PRNGKey(0)
    v = jax.random.normal(key, (2, 8, 4), dtype=jnp.float32)

    out = positional_encoding_pallas(v, sigma, m)
    out = jax.block_until_ready(out)

    ref = _reference(np.asarray(v), sigma, m)
    assert out.shape == ref.shape, (out.shape, ref.shape)
    np.testing.assert_allclose(np.asarray(out), ref, rtol=1e-5, atol=3e-5)

    print("KERNEL_OK")
</pallas_src>

<mosaic_0001>
module attributes {stable_mosaic.version = 11 : i64} {
  func.func @_pe_kernel(%arg0: i32, %arg1: memref<8x8xf32, #tpu.memory_space<vmem>>, %arg2: memref<1x128xf32, #tpu.memory_space<vmem>>, %arg3: memref<1x128xf32, #tpu.memory_space<vmem>>, %arg4: memref<8x128xf32, #tpu.memory_space<vmem>>) attributes {dimension_semantics = [#tpu.dimension_semantics<parallel>], iteration_bounds = array<i64: 1>, scalar_prefetch = 0 : i64, scratch_operands = 0 : i64, tpu.core_type = #tpu.core_type<tc>, window_params = [{transform_indices = @transform_0, window_bounds = array<i64: 8, 8>}, {pipeline_mode = #tpu.pipeline_mode<synchronous>, transform_indices = @transform_1, window_bounds = array<i64: 1, 128>}, {pipeline_mode = #tpu.pipeline_mode<synchronous>, transform_indices = @transform_2, window_bounds = array<i64: 1, 128>}, {transform_indices = @transform_3, window_bounds = array<i64: 8, 128>}]} {
    %c0 = arith.constant 0 : index
    %c0_0 = arith.constant 0 : index
    %0 = vector.load %arg1[%c0, %c0_0] : memref<8x8xf32, #tpu.memory_space<vmem>>, vector<8x8xf32>
    %1 = vector.extract_strided_slice %0 {offsets = [0, 0], sizes = [8, 1], strides = [1, 1]} : vector<8x8xf32> to vector<8x1xf32>
    %2 = vector.shape_cast %1 : vector<8x1xf32> to vector<8x1xf32>
    %3 = vector.broadcast %2 : vector<8x1xf32> to vector<8x16xf32>
    %4 = vector.extract_strided_slice %0 {offsets = [0, 1], sizes = [8, 1], strides = [1, 1]} : vector<8x8xf32> to vector<8x1xf32>
    %5 = vector.shape_cast %4 : vector<8x1xf32> to vector<8x1xf32>
    %6 = vector.broadcast %5 : vector<8x1xf32> to vector<8x16xf32>
    %7 = vector.extract_strided_slice %0 {offsets = [0, 2], sizes = [8, 1], strides = [1, 1]} : vector<8x8xf32> to vector<8x1xf32>
    %8 = vector.shape_cast %7 : vector<8x1xf32> to vector<8x1xf32>
    %9 = vector.broadcast %8 : vector<8x1xf32> to vector<8x16xf32>
    %10 = vector.extract_strided_slice %0 {offsets = [0, 3], sizes = [8, 1], strides = [1, 1]} : vector<8x8xf32> to vector<8x1xf32>
    %11 = vector.shape_cast %10 : vector<8x1xf32> to vector<8x1xf32>
    %12 = vector.broadcast %11 : vector<8x1xf32> to vector<8x16xf32>
    %13 = vector.extract_strided_slice %0 {offsets = [0, 4], sizes = [8, 1], strides = [1, 1]} : vector<8x8xf32> to vector<8x1xf32>
    %14 = vector.shape_cast %13 : vector<8x1xf32> to vector<8x1xf32>
    %15 = vector.broadcast %14 : vector<8x1xf32> to vector<8x16xf32>
    %16 = vector.extract_strided_slice %0 {offsets = [0, 5], sizes = [8, 1], strides = [1, 1]} : vector<8x8xf32> to vector<8x1xf32>
    %17 = vector.shape_cast %16 : vector<8x1xf32> to vector<8x1xf32>
    %18 = vector.broadcast %17 : vector<8x1xf32> to vector<8x16xf32>
    %19 = vector.extract_strided_slice %0 {offsets = [0, 6], sizes = [8, 1], strides = [1, 1]} : vector<8x8xf32> to vector<8x1xf32>
    %20 = vector.shape_cast %19 : vector<8x1xf32> to vector<8x1xf32>
    %21 = vector.broadcast %20 : vector<8x1xf32> to vector<8x16xf32>
    %22 = vector.extract_strided_slice %0 {offsets = [0, 7], sizes = [8, 1], strides = [1, 1]} : vector<8x8xf32> to vector<8x1xf32>
    %23 = vector.shape_cast %22 : vector<8x1xf32> to vector<8x1xf32>
    %24 = vector.broadcast %23 : vector<8x1xf32> to vector<8x16xf32>
    %25 = tpu.concatenate %3, %6, %9, %12, %15, %18, %21, %24 in 1 : vector<8x16xf32>, vector<8x16xf32>, vector<8x16xf32>, vector<8x16xf32>, vector<8x16xf32>, vector<8x16xf32>, vector<8x16xf32>, vector<8x16xf32> -> vector<8x128xf32>
    %c0_1 = arith.constant 0 : index
    %c0_2 = arith.constant 0 : index
    %26 = vector.load %arg2[%c0_1, %c0_2] : memref<1x128xf32, #tpu.memory_space<vmem>>, vector<1x128xf32>
    %27 = vector.broadcast %26 : vector<1x128xf32> to vector<8x128xf32>
    %28 = arith.mulf %25, %27 : vector<8x128xf32>
    %c0_3 = arith.constant 0 : index
    %c0_4 = arith.constant 0 : index
    %29 = vector.load %arg3[%c0_3, %c0_4] : memref<1x128xf32, #tpu.memory_space<vmem>>, vector<1x128xf32>
    %30 = vector.broadcast %29 : vector<1x128xf32> to vector<8x128xf32>
    %31 = arith.addf %28, %30 : vector<8x128xf32>
    %32 = math.cos %31 : vector<8x128xf32>
    %c0_5 = arith.constant 0 : index
    %c0_6 = arith.constant 0 : index
    %33 = vector.load %arg4[%c0_5, %c0_6] : memref<8x128xf32, #tpu.memory_space<vmem>>, vector<8x128xf32>
    tpu.vector_store %arg4[%c0_5, %c0_6], %32 {strides = array<i32>} : memref<8x128xf32, #tpu.memory_space<vmem>>, vector<8x128xf32>,
    return
  }
  func.func @transform_0(%arg0: i32) -> (i32, i32) {
    %c0_i32 = arith.constant 0 : i32
    %c0_i32_0 = arith.constant 0 : i32
    return %arg0, %c0_i32 : i32, i32
  }
  func.func @transform_1(%arg0: i32) -> (i32, i32) {
    %c0_i32 = arith.constant 0 : i32
    %c0_i32_0 = arith.constant 0 : i32
    %c0_i32_1 = arith.constant 0 : i32
    return %c0_i32, %c0_i32_0 : i32, i32
  }
  func.func @transform_2(%arg0: i32) -> (i32, i32) {
    %c0_i32 = arith.constant 0 : i32
    %c0_i32_0 = arith.constant 0 : i32
    %c0_i32_1 = arith.constant 0 : i32
    return %c0_i32, %c0_i32_0 : i32, i32
  }
  func.func @transform_3(%arg0: i32) -> (i32, i32) {
    %c0_i32 = arith.constant 0 : i32
    %c0_i32_0 = arith.constant 0 : i32
    return %arg0, %c0_i32 : i32, i32
  }
}

</mosaic_0001>

<llo_original>
// kernel: tpu_custom_call.1
$region0: #{tpu_custom_call.1}
  #allocation0 [shape = 'u32[]', space=smem, size = 0x4, offset = 0x4, fixed_abs, tag = 'smem constant byte address 0x4 - core index']
  #allocation1 [shape = 'u32[72,128]{1,0:T(1,128)}', space=vmem, size = 0x9000, scoped, tag = 'internal scratch']
  %s0 = inlined_call_operand.hbm [shape: f32[8,8], index: 0, kind: input, shape index: {}]
  %s1 = inlined_call_operand.hbm [shape: f32[1,128], index: 1, kind: input, shape index: {}]
  %s2 = inlined_call_operand.vmem [shape: f32[1,128], index: 2, kind: input, shape index: {}]
  %s3 = inlined_call_operand.hbm [shape: f32[8,128], index: 3, kind: output, shape index: {}]
  %s4 = sld [smem:[#allocation0]]
  $region30: #{tpu_custom_call.1} parent=0
    _
  %s6 = ssub.s32 1, %s4
  %s7 = scalar_select 0, %s6, %s4
  $region1: #{tpu_custom_call.1} parent=0
    #allocation2 [shape = 'u8[4096]{0}', space=vmem, size = 0x1000, scoped, tag = 'input window, operand 0, single buffered']
    #allocation3 [shape = 's32[1]{0}', space=sflag, size = 0x4, scoped, tag = 'scoped memory for tpu_custom_call.1']
    #allocation4 [shape = 's32[1]{0}', space=sflag, size = 0x4, scoped, tag = 'scoped memory for tpu_custom_call.1']
    #allocation5 [shape = 'u8[512]{0}', space=vmem, size = 0x400, scoped, tag = 'input window, operand 1, single buffered']
    #allocation6 [shape = 's32[1]{0}', space=sflag, size = 0x4, scoped, tag = 'scoped memory for tpu_custom_call.1']
    #allocation7 [shape = 'u8[4096]{0}', space=vmem, size = 0x1000, scoped, tag = 'output window, operand 0, single buffered']
    %8 = vsyncpa [#allocation3], 0
    %9 = vsyncpa [#allocation6], 0
    %10 = vsyncpa [#allocation4], 0
    // Predicated region
    $region2: #{tpu_custom_call.1} parent=1 // pred_check
      _
    $region3: #{tpu_custom_call.1} parent=1 // pred_check_branch
      %12 = sbr.rel (0) target = $region5
    $region4: #{tpu_custom_call.1} parent=1 // pred_region
      %14 = vsyncadd [#allocation3], 0
      %s16 = sshll.u32 %s0, 4
      %s17 = int_to_ptr.hbm [resolvable:$true] %s16
      %s18 = sshll.u32 [#allocation2], 4
      %s19 = int_to_ptr.vmem [resolvable:$true] %s18
      %21 = dma.hbm_to_vmem [thread:$0]  %s17, 128, %s19, [#allocation3]
    $region5: #{tpu_custom_call.1} parent=1 // pred_fallthru
      _
    // Predicated region
    $region6: #{tpu_custom_call.1} parent=1 // pred_check
      _
    $region7: #{tpu_custom_call.1} parent=1 // pred_check_branch
      %23 = sbr.rel (0) target = $region9
    $region8: #{tpu_custom_call.1} parent=1 // pred_region
      %25 = vsyncadd [#allocation6], 0
      %s27 = sshll.u32 %s1, 4
      %s28 = int_to_ptr.hbm [resolvable:$true] %s27
      %s29 = sshll.u32 [#allocation5], 4
      %s30 = int_to_ptr.vmem [resolvable:$true] %s29
      %32 = dma.hbm_to_vmem [thread:$0]  %s28, 16, %s30, [#allocation6]
    $region9: #{tpu_custom_call.1} parent=1 // pred_fallthru
      _
    // Predicated region
    $region10: #{tpu_custom_call.1} parent=1 // pred_check
      _
    $region11: #{tpu_custom_call.1} parent=1 // pred_check_branch
      %34 = sbr.rel (0) target = $region13
    $region12: #{tpu_custom_call.1} parent=1 // pred_region
      _
    $region13: #{tpu_custom_call.1} parent=1 // pred_fallthru
      _
    // Predicated region
    $region14: #{tpu_custom_call.1} parent=1 // pred_check
      _
    $region15: #{tpu_custom_call.1} parent=1 // pred_check_branch
      %36 = sbr.rel (0) target = $region17
    $region16: #{tpu_custom_call.1} parent=1 // pred_region
      %38 = dma.done [#allocation3], 128
    $region17: #{tpu_custom_call.1} parent=1 // pred_fallthru
      _
    // Predicated region
    $region18: #{tpu_custom_call.1} parent=1 // pred_check
      _
    $region19: #{tpu_custom_call.1} parent=1 // pred_check_branch
      %40 = sbr.rel (0) target = $region21
    $region20: #{tpu_custom_call.1} parent=1 // pred_region
      %42 = dma.done [#allocation6], 16
    $region21: #{tpu_custom_call.1} parent=1 // pred_fallthru
      _
    %v43 = vld [vmem:[#allocation2] sm:$0xff]
    %45 = vset.pattern.permute.xlu0 0
    %46 = vperm.xlu0 %45, %v43
    %v47 = vpop.permute.xlu0 %46
    %49 = vset.pattern.permute.xlu0 1
    %50 = vperm.xlu0 %49, %v43
    %v51 = vpop.permute.xlu0 %50
    %53 = vset.pattern.permute.xlu0 2
    %54 = vperm.xlu0 %53, %v43
    %v55 = vpop.permute.xlu0 %54
    %57 = vset.pattern.permute.xlu0 3
    %58 = vperm.xlu0 %57, %v43
    %v59 = vpop.permute.xlu0 %58
    %61 = vset.pattern.permute.xlu0 4
    %62 = vperm.xlu0 %61, %v43
    %v63 = vpop.permute.xlu0 %62
    %65 = vset.pattern.permute.xlu0 5
    %66 = vperm.xlu0 %65, %v43
    %v67 = vpop.permute.xlu0 %66
    %69 = vset.pattern.permute.xlu0 6
    %70 = vperm.xlu0 %69, %v43
    %v71 = vpop.permute.xlu0 %70
    %73 = vset.pattern.permute.xlu0 7
    %74 = vperm.xlu0 %73, %v43
    %v75 = vpop.permute.xlu0 %74
    %vm77 = vcmask 130048
    %v78 = vsel %vm77, %v47, %v51
    %vm79 = vcmask 261120
    %v80 = vsel %vm79, %v78, %v55
    %vm81 = vcmask 392192
    %v82 = vsel %vm81, %v80, %v59
    %vm83 = vcmask 523264
    %v84 = vsel %vm83, %v82, %v63
    %vm85 = vcmask 654336
    %v86 = vsel %vm85, %v84, %v67
    %vm87 = vcmask 785408
    %v88 = vsel %vm87, %v86, %v71
    %vm89 = vcmask 916480
    %v90 = vsel %vm89, %v88, %v75
    %v91 = vld [vmem:[#allocation5] sm:$0x1]
    %v93 = vperm.slane %v91, 0
    %v95 = vmul.f32 %v90, %v93
    %v96 = vld [vmem:[%s2] sm:$0x1]
    %v98 = vperm.slane %v96, 0
    %v100 = vadd.f32 %v95, %v98
    %v101 = vand.u32 2147483647, %v100
    %vm102 = vcmp.le.f32.partialorder %v101, 0.7853982
    %vm103 = vcmp.lt.s32.totalorder %v100, 0
    %v104 = vand.u32 %v100, 2139095040
    %v105 = vshrl.u32 %v104, 23
    %v106 = vsub.s32 %v105, 127
    %v107 = vand.u32 2147483647, %v100
    %v108 = vand.u32 %v107, 8388607
    %v109 = vor.u32 %v108, 8388608
    %v110 = vsub.s32 0, %v109
    %v111 = vadd.s32 %v106, 1
    %vm112 = vcmp.gt.s32.totalorder %v111, 0
    %v113 = vsel %vm112, %v111, 0
    %v114 = vshrl.u32 %v113, 5
    %v115 = vand.u32 %v113, 31
    %v116 = vsub.s32 32, %v115
    %v117 = vshrl.u32 683565275, %v116
    %v118 = vshll.u32 683565275, %v115
    %v119 = vshrl.u32 2475754826, %v116
    %v120 = vor.u32 %v118, %v119
    %v121 = vshll.u32 2475754826, %v115
    %v122 = vshrl.u32 2131351028, %v116
    %v123 = vor.u32 %v121, %v122
    %v124 = vshll.u32 2131351028, %v115
    %v125 = vshrl.u32 2102212464, %v116
    %v126 = vor.u32 %v124, %v125
    %v127 = vshll.u32 2102212464, %v115
    %v128 = vshrl.u32 920167782, %v116
    %v129 = vor.u32 %v127, %v128
    %v130 = vshll.u32 920167782, %v115
    %v131 = vshrl.u32 1326507024, %v116
    %v132 = vor.u32 %v130, %v131
    %vm133 = vcmp.lt.s32.totalorder %v114, 1
    %vm134 = vcmp.lt.s32.totalorder %v114, 2
    %vm135 = vcmp.lt.s32.totalorder %v114, 3
    %vm136 = vcmp.lt.s32.totalorder %v114, 4
    %v137 = vsel %vm133, %v117, %v120
    %v138 = vsel %vm136, %v126, 2102212464
    %v139 = vsel %vm135, %v123, %v138
    %v140 = vsel %vm134, %v137, %v139
    %v141 = vsel %vm133, %v120, %v123
    %v142 = vsel %vm136, %v129, 920167782
    %v143 = vsel %vm135, %v126, %v142
    %v144 = vsel %vm134, %v141, %v143
    %v145 = vsel %vm133, %v123, %v126
    %v146 = vsel %vm136, %v132, 1326507024
    %v147 = vsel %vm135, %v129, %v146
    %v148 = vsel %vm134, %v145, %v147
    %v149 = vshll.u32 %v109, 8
    %v150 = vand.u32 %v149, 65535
    %v151 = vshrl.u32 %v149, 16
    %v152 = vand.u32 %v148, 65535
    %v153 = vshrl.u32 %v148, 16
    %v154 = vmul.u32 %v150, %v152
    %v155 = vmul.u32 %v150, %v153
    %v156 = vmul.u32 %v151, %v152
    %v157 = vmul.u32 %v151, %v153
    %v158 = vshll.u32 %v155, 16
    %v159 = vshrl.u32 %v155, 16
    %v160 = vshll.u32 %v156, 16
    %v161 = vshrl.u32 %v156, 16
    %vm162 = vc.u32 %v154, %v158
    %v163 = vsel %vm162, 1, 0
    %v164 = vadd.s32 %v154, %v158
    %v165 = vadd.s32 %v157, %v163
    %vm166 = vc.u32 %v164, %v160
    %v167 = vsel %vm166, 1, 0
    %v168 = vadd.s32 %v164, %v160
    %v169 = vadd.s32 %v165, %v167
    %v170 = vadd.s32 %v169, %v159
    %v171 = vadd.s32 %v170, %v161
    %v172 = vand.u32 %v149, 65535
    %v173 = vshrl.u32 %v149, 16
    %v174 = vand.u32 %v144, 65535
    %v175 = vshrl.u32 %v144, 16
    %v176 = vmul.u32 %v172, %v174
    %v177 = vmul.u32 %v172, %v175
    %v178 = vmul.u32 %v173, %v174
    %v179 = vmul.u32 %v173, %v175
    %v180 = vshll.u32 %v177, 16
    %v181 = vshrl.u32 %v177, 16
    %v182 = vshll.u32 %v178, 16
    %v183 = vshrl.u32 %v178, 16
    %vm184 = vc.u32 %v176, %v180
    %v185 = vsel %vm184, 1, 0
    %v186 = vadd.s32 %v176, %v180
    %v187 = vadd.s32 %v179, %v185
    %vm188 = vc.u32 %v186, %v182
    %v189 = vsel %vm188, 1, 0
    %v190 = vadd.s32 %v186, %v182
    %v191 = vadd.s32 %v187, %v189
    %v192 = vadd.s32 %v191, %v181
    %v193 = vadd.s32 %v192, %v183
    %v194 = vmul.u32 %v149, %v140
    %v195 = vadd.s32 %v171, %v190
    %vm196 = vc.u32 %v171, %v190
    %v197 = vadd.s32 %v193, 1
    %v198 = vsel %vm196, %v197, %v193
    %v199 = vadd.s32 %v194, %v198
    %v200 = vadd.s32 %v199, 536870912
    %v201 = vshrl.u32 %v200, 30
    %v202 = vshll.u32 %v201, 30
    %v203 = vsub.s32 %v199, %v202
    %vm204 = vcmp.lt.s32.totalorder %v203, 0
    %v205 = vsub.s32 0, %v203
    %v206 = vsel %vm204, %v205, %v203
    %v207 = vclz %v206
    %v208 = vsub.s32 %v207, 2
    %vm209 = vcmp.gt.s32.totalorder 0, %v208
    %v210 = vsel %vm209, 0, %v208
    %v211 = vsub.s32 32, %v210
    %v212 = vshll.u32 %v203, %v210
    %v213 = vshrl.u32 %v195, %v211
    %v214 = vor.u32 %v212, %v213
    %v215 = vsub.s32 4294967266, %v210
    %v216 = vadd.s32 %v215, 127
    %v217 = vshll.u32 %v216, 23
    %v218 = vor.u32 4788187, %v217
    %v219 = vand.u32 2147483647, %v218
    %v221 = vcvt.s32.f32 %v214
    %v222 = vmul.f32 %v221, %v219
    %v223 = vxor.u32 %v222, 2147483648
    %v224 = vsel %vm103, %v223, %v222
    %v225 = vsub.s32 4, %v201
    %v226 = vsel %vm103, %v225, %v201
    %v227 = vsel %vm102, %v100, %v224
    %v228 = vsel %vm102, 0, %v226
    %v229 = vmul.f32 %v227, %v227
    %v230 = vmul.f32 %v229, -0.001358992
    %v231 = vadd.f32 %v230, 0.041655596
    %v232 = vmul.f32 %v229, %v231
    %v233 = vadd.f32 %v232, -0.4999988
    %v234 = vmul.f32 %v229, %v233
    %v235 = vadd.f32 1.0, %v234
    %v236 = vmul.f32 %v227, %v227
    %v237 = vmul.f32 %v236, -0.00019511016
    %v238 = vadd.f32 %v237, 0.008332121
    %v239 = vmul.f32 %v236, %v238
    %v240 = vadd.f32 %v239, -0.16666654
    %v241 = vmul.f32 %v236, %v240
    %v242 = vadd.f32 %v241, 1.0
    %v243 = vmul.f32 %v242, %v227
    %vm244 = vweird.f32 %v100
    %v245 = vand.u32 %v228, 3
    %vm246 = vcmp.lt.s32.totalorder %v245, 2
    %vm247 = vcmp.eq.s32.totalorder %v245, 0
    %v248 = vxor.u32 %v243, 2147483648
    %v249 = vsel %vm247, %v235, %v248
    %vm250 = vcmp.eq.s32.totalorder %v245, 2
    %v251 = vxor.u32 %v235, 2147483648
    %v252 = vsel %vm250, %v251, %v243
    %v253 = vsel %vm246, %v249, %v252
    %v254 = vsel %vm244, nan, %v253
    %255 = vst [vmem:[#allocation7] sm:$0xff] %v254
    // Predicated region
    $region22: #{tpu_custom_call.1} parent=1 // pred_check
      _
    $region23: #{tpu_custom_call.1} parent=1 // pred_check_branch
      %257 = sbr.rel (0) target = $region25
    $region24: #{tpu_custom_call.1} parent=1 // pred_region
      %259 = vsyncadd [#allocation4], 0
      %s261 = sshll.u32 [#allocation7], 4
      %s262 = int_to_ptr.vmem [resolvable:$true] %s261
      %s263 = sshll.u32 %s3, 4
      %s264 = int_to_ptr.hbm [resolvable:$true] %s263
      %266 = dma.vmem_to_hbm [thread:$0]  %s262, 128, %s264, [#allocation4]
    $region25: #{tpu_custom_call.1} parent=1 // pred_fallthru
      _
    // Predicated region
    $region26: #{tpu_custom_call.1} parent=1 // pred_check
      _
    $region27: #{tpu_custom_call.1} parent=1 // pred_check_branch
      %268 = sbr.rel (0) target = $region29
    $region28: #{tpu_custom_call.1} parent=1 // pred_region
      %270 = dma.done [#allocation4], 128
    $region29: #{tpu_custom_call.1} parent=1 // pred_fallthru
      _
    %271 = vsyncpa [#allocation3], 1
    %272 = vsyncpa [#allocation6], 1
    %273 = vsyncpa [#allocation4], 1

</llo_original>
